<compile_context>
chip_gen: v7x
topology: tpu7x:2x2x1
jax: 0.10.0
libtpu: 0.0.40
codegen_flags: <defaults>
</compile_context>

<pallas_src>
import jax
import jax.numpy as jnp
from jax.experimental import pallas as pl
from jax.experimental.pallas import tpu as pltpu

LANE = 128  # TPU lane width / MXU tile width


def _round_up(n, m):
    return ((n + m - 1) // m) * m


def mlp_kernel(x_ref, w1_ref, b1_ref, w2_ref, b2_ref, o_ref):
    """Fused Linear -> ReLU -> Linear -> Sigmoid on one (tb, D_in) batch tile."""
    # Cast activations to the weight dtype in VMEM (VPU work hidden under the MXU;
    # avoids an extra HBM cast pass in the wrapper on the bf16 path).
    x = x_ref[...].astype(w1_ref.dtype)
    # Layer 1 on the MXU with f32 accumulation; bias + ReLU in f32 on the VPU.
    h = jnp.dot(x, w1_ref[...], preferred_element_type=jnp.float32)
    h = jnp.maximum(h + b1_ref[...], 0.0)
    # Layer 2: operands in the weight dtype (intentional downcast on the bf16 path,
    # covered by tolerance), f32 accumulation + f32 epilogue.
    h = h.astype(w2_ref.dtype)
    logits = jnp.dot(h, w2_ref[...], preferred_element_type=jnp.float32)
    logits = logits + b2_ref[...]
    o_ref[...] = jax.nn.sigmoid(logits).astype(o_ref.dtype)  # sigmoid on the EUP


def pad_params(w1, b1, w2, b2, *, matmul_dtype=jnp.float32):
    """One-time (init-time) parameter layout prep — do NOT call per forward step.

    Pads the hidden dim to the 128-lane width so the hidden activation and both
    MXU passes are lane-dense.  Zero padding is exact: padded hidden units are
    relu(0 + 0) = 0 and multiply zero rows of w2.  Input/class dims stay unpadded.
    """
    D_in, H = w1.shape
    Hh, C = w2.shape
    assert Hh == H
    Hp = _round_up(H, LANE)
    w1_p = jnp.zeros((D_in, Hp), matmul_dtype).at[:, :H].set(w1.astype(matmul_dtype))
    b1_p = jnp.zeros((1, Hp), jnp.float32).at[:, :H].set(b1.reshape(1, H).astype(jnp.float32))
    w2_p = jnp.zeros((Hp, C), matmul_dtype).at[:H, :].set(w2.astype(matmul_dtype))
    b2_p = b2.reshape(1, C).astype(jnp.float32)
    return w1_p, b1_p, w2_p, b2_p


def _batch_semantics(num_tiles):
    # Only CORE_PARALLEL actually changes codegen to split grid steps across v7x's
    # two TensorCores; "parallel" vs "arbitrary" is near-neutral elsewhere.
    kind = jax.devices()[0].device_kind.lower()
    if num_tiles >= 2 and ("v7" in kind or "tpu7" in kind or "7x" in kind):
        return (pltpu.CORE_PARALLEL,)
    return (pltpu.PARALLEL,)


def mlp_forward(x, w1_p, b1_p, w2_p, b2_p, *, block_batch=512, vmem_limit_bytes=None):
    """Fused MLP forward.

    x:    (B, D_in) activations (any float dtype; cast to the weight dtype in-kernel).
    w1_p: (D_in, Hp), b1_p: (1, Hp), w2_p: (Hp, C), b2_p: (1, C) from pad_params().
    Returns (B, C) float32 == sigmoid(relu(x @ w1 + b1) @ w2 + b2).
    """
    B, D_in = x.shape
    Dw, Hp = w1_p.shape
    Hw, C = w2_p.shape
    assert Dw == D_in and Hw == Hp and b1_p.shape == (1, Hp) and b2_p.shape == (1, C)

    # Batch tiling: small batches run as a single full-extent tile (grid=(1,));
    # large batches use 128-multiple tiles so Pallas double-buffers the x/out DMAs
    # behind compute and the MXU rows stay well fed on every generation.
    if B <= block_batch:
        tb = B
        Bp = B
    else:
        tb = _round_up(block_batch, LANE)
        Bp = _round_up(B, tb)
    num_tiles = Bp // tb

    # Pad only the batch dim, and only when needed (no per-call feature padding).
    x_in = x if Bp == B else jnp.zeros((Bp, D_in), x.dtype).at[:B, :].set(x)

    x_isz = jnp.dtype(x.dtype).itemsize
    w_isz = jnp.dtype(w1_p.dtype).itemsize

    if vmem_limit_bytes is None:
        need = (
            2 * tb * D_in * x_isz                          # double-buffered x tiles
            + 2 * tb * C * 4                               # double-buffered out tiles
            + (D_in * Hp + Hp * C) * w_isz + (Hp + C) * 4  # single-buffered params
            + tb * Hp * 4 + tb * C * 4                     # f32 intermediates
        )
        # 4x headroom but capped v7x-safe (64 MiB/TC physical); raise explicitly on
        # v6e/v5e (128 MiB VMEM) if you scale tb or the weights far beyond this.
        vmem_limit_bytes = int(min(max(4 * need, 16 * 2**20), 48 * 2**20))

    cost = pl.CostEstimate(
        flops=2 * Bp * (D_in * Hp + Hp * C),
        transcendentals=Bp * C,  # sigmoid
        bytes_accessed=(Bp * D_in * x_isz + (D_in * Hp + Hp * C) * w_isz
                        + (Hp + C) * 4 + Bp * C * 4),
    )

    resident = dict(pipeline_mode=pl.Buffered(1))  # constant-index params: no 2nd buffer

    out = pl.pallas_call(
        mlp_kernel,
        out_shape=jax.ShapeDtypeStruct((Bp, C), jnp.float32),
        grid=(num_tiles,),
        in_specs=[
            pl.BlockSpec((tb, D_in), lambda i: (i, 0)),               # batch-tiled, pipelined
            pl.BlockSpec((D_in, Hp), lambda i: (0, 0), **resident),   # resident weights/biases
            pl.BlockSpec((1, Hp), lambda i: (0, 0), **resident),
            pl.BlockSpec((Hp, C), lambda i: (0, 0), **resident),
            pl.BlockSpec((1, C), lambda i: (0, 0), **resident),
        ],
        # C rides unpadded (full-extent) -> lane-masked store, but no wrapper-side
        # slice pass over HBM afterwards (cheaper overall for tiny class counts).
        out_specs=pl.BlockSpec((tb, C), lambda i: (i, 0)),
        compiler_params=pltpu.CompilerParams(
            dimension_semantics=_batch_semantics(num_tiles),
            vmem_limit_bytes=vmem_limit_bytes,
        ),
        cost_estimate=cost,
    )(x_in, w1_p, b1_p, w2_p, b2_p)

    return out if Bp == B else out[:B]


if __name__ == "__main__":
    # Shapes consistent with MLP(args): input_size=32, hidden_size=64, class_num=16.
    batch, input_size, hidden_size, class_num = 64, 32, 64, 16

    key = jax.random.PRNGKey(0)
    kx, kw1, kb1, kw2, kb2 = jax.random.split(key, 5)
    x = jax.random.normal(kx, (batch, input_size), dtype=jnp.float32)

    # PyTorch-like uniform fan-in init, stored [in, out].
    bound1 = 1.0 / jnp.sqrt(input_size)
    w1 = jax.random.uniform(kw1, (input_size, hidden_size), jnp.float32, -bound1, bound1)
    b1 = jax.random.uniform(kb1, (1, hidden_size), jnp.float32, -bound1, bound1)
    bound2 = 1.0 / jnp.sqrt(hidden_size)
    w2 = jax.random.uniform(kw2, (hidden_size, class_num), jnp.float32, -bound2, bound2)
    b2 = jax.random.uniform(kb2, (1, class_num), jnp.float32, -bound2, bound2)

    # Pure-JAX reference.
    ref = jax.nn.sigmoid(jnp.maximum(x @ w1 + b1, 0.0) @ w2 + b2)

    # f32 path, single batch tile (grid=(1,)). Params padded once, outside the call.
    p32 = pad_params(w1, b1, w2, b2, matmul_dtype=jnp.float32)
    out_f32 = mlp_forward(x, *p32)
    jax.block_until_ready(out_f32)
    assert out_f32.shape == (batch, class_num)
    assert jnp.allclose(out_f32, ref, atol=1e-5, rtol=1e-5), "f32 mismatch vs reference"

    # bf16 matmul operands (MXU-native on v5e/v6e/v7x), f32 accumulate + epilogue.
    pbf = pad_params(w1, b1, w2, b2, matmul_dtype=jnp.bfloat16)
    out_bf16 = mlp_forward(x, *pbf)
    jax.block_until_ready(out_bf16)
    assert jnp.allclose(out_bf16, ref, atol=3e-2), "bf16 mismatch vs reference"

    # Multi-tile path (batch tiling + batch pad + slice): 136 rows, tb=128 -> grid=(2,).
    xb = jax.random.normal(kx, (136, input_size), dtype=jnp.float32)
    refb = jax.nn.sigmoid(jnp.maximum(xb @ w1 + b1, 0.0) @ w2 + b2)
    out_b = mlp_forward(xb, *p32, block_batch=128)
    jax.block_until_ready(out_b)
    assert out_b.shape == (136, class_num)
    assert jnp.allclose(out_b, refb, atol=1e-5, rtol=1e-5), "tiled f32 mismatch vs reference"

    print("KERNEL_OK")
</pallas_src>

<mosaic_0001>
module attributes {stable_mosaic.version = 11 : i64} {
  func.func @mlp_kernel(%arg0: i32, %arg1: memref<64x32xf32, #tpu.memory_space<vmem>>, %arg2: memref<32x128xf32, #tpu.memory_space<vmem>>, %arg3: memref<1x128xf32, #tpu.memory_space<vmem>>, %arg4: memref<128x16xf32, #tpu.memory_space<vmem>>, %arg5: memref<1x16xf32, #tpu.memory_space<vmem>>, %arg6: memref<64x16xf32, #tpu.memory_space<vmem>>) attributes {dimension_semantics = [#tpu.dimension_semantics<parallel>], iteration_bounds = array<i64: 1>, scalar_prefetch = 0 : i64, scratch_operands = 0 : i64, tpu.core_type = #tpu.core_type<tc>, window_params = [{transform_indices = @transform_0, window_bounds = array<i64: 64, 32>}, {pipeline_mode = #tpu.pipeline_mode<synchronous>, transform_indices = @transform_1, window_bounds = array<i64: 32, 128>}, {pipeline_mode = #tpu.pipeline_mode<synchronous>, transform_indices = @transform_2, window_bounds = array<i64: 1, 128>}, {pipeline_mode = #tpu.pipeline_mode<synchronous>, transform_indices = @transform_3, window_bounds = array<i64: 128, 16>}, {pipeline_mode = #tpu.pipeline_mode<synchronous>, transform_indices = @transform_4, window_bounds = array<i64: 1, 16>}, {transform_indices = @transform_5, window_bounds = array<i64: 64, 16>}]} {
    %c0 = arith.constant 0 : index
    %c0_0 = arith.constant 0 : index
    %0 = vector.load %arg1[%c0, %c0_0] : memref<64x32xf32, #tpu.memory_space<vmem>>, vector<64x32xf32>
    %c0_1 = arith.constant 0 : index
    %c0_2 = arith.constant 0 : index
    %1 = vector.load %arg2[%c0_1, %c0_2] : memref<32x128xf32, #tpu.memory_space<vmem>>, vector<32x128xf32>
    %cst = arith.constant dense<0.000000e+00> : vector<64x128xf32>
    %2 = tpu.matmul %0, %1, %cst {dimension_numbers = #tpu.dot_dimension_numbers<[1], [0], [0], [1], [0, 0, 1, 1], [], []>} : vector<64x32xf32>, vector<32x128xf32>, vector<64x128xf32> -> vector<64x128xf32>
    %c0_3 = arith.constant 0 : index
    %c0_4 = arith.constant 0 : index
    %3 = vector.load %arg3[%c0_3, %c0_4] : memref<1x128xf32, #tpu.memory_space<vmem>>, vector<1x128xf32>
    %4 = vector.broadcast %3 : vector<1x128xf32> to vector<64x128xf32>
    %5 = arith.addf %2, %4 : vector<64x128xf32>
    %cst_5 = arith.constant 0.000000e+00 : f32
    %6 = vector.broadcast %cst_5 : f32 to vector<64x128xf32>
    %7 = arith.maximumf %5, %6 : vector<64x128xf32>
    %c0_6 = arith.constant 0 : index
    %c0_7 = arith.constant 0 : index
    %8 = vector.load %arg4[%c0_6, %c0_7] : memref<128x16xf32, #tpu.memory_space<vmem>>, vector<128x16xf32>
    %cst_8 = arith.constant dense<0.000000e+00> : vector<64x16xf32>
    %9 = tpu.matmul %7, %8, %cst_8 {dimension_numbers = #tpu.dot_dimension_numbers<[1], [0], [0], [1], [0, 0, 1, 1], [], []>} : vector<64x128xf32>, vector<128x16xf32>, vector<64x16xf32> -> vector<64x16xf32>
    %c0_9 = arith.constant 0 : index
    %c0_10 = arith.constant 0 : index
    %10 = vector.load %arg5[%c0_9, %c0_10] : memref<1x16xf32, #tpu.memory_space<vmem>>, vector<1x16xf32>
    %11 = vector.broadcast %10 : vector<1x16xf32> to vector<64x16xf32>
    %12 = arith.addf %9, %11 : vector<64x16xf32>
    %13 = arith.negf %12 : vector<64x16xf32>
    %14 = math.exp %13 : vector<64x16xf32>
    %cst_11 = arith.constant 1.000000e+00 : f32
    %15 = vector.broadcast %cst_11 : f32 to vector<64x16xf32>
    %16 = arith.addf %15, %14 : vector<64x16xf32>
    %17 = arith.divf %15, %16 : vector<64x16xf32>
    %c0_12 = arith.constant 0 : index
    %c0_13 = arith.constant 0 : index
    %18 = vector.load %arg6[%c0_12, %c0_13] : memref<64x16xf32, #tpu.memory_space<vmem>>, vector<64x16xf32>
    tpu.vector_store %arg6[%c0_12, %c0_13], %17 {strides = array<i32>} : memref<64x16xf32, #tpu.memory_space<vmem>>, vector<64x16xf32>,
    return
  }
  func.func @transform_0(%arg0: i32) -> (i32, i32) {
    %c0_i32 = arith.constant 0 : i32
    %c0_i32_0 = arith.constant 0 : i32
    return %arg0, %c0_i32 : i32, i32
  }
  func.func @transform_1(%arg0: i32) -> (i32, i32) {
    %c0_i32 = arith.constant 0 : i32
    %c0_i32_0 = arith.constant 0 : i32
    %c0_i32_1 = arith.constant 0 : i32
    return %c0_i32, %c0_i32_0 : i32, i32
  }
  func.func @transform_2(%arg0: i32) -> (i32, i32) {
    %c0_i32 = arith.constant 0 : i32
    %c0_i32_0 = arith.constant 0 : i32
    %c0_i32_1 = arith.constant 0 : i32
    return %c0_i32, %c0_i32_0 : i32, i32
  }
  func.func @transform_3(%arg0: i32) -> (i32, i32) {
    %c0_i32 = arith.constant 0 : i32
    %c0_i32_0 = arith.constant 0 : i32
    %c0_i32_1 = arith.constant 0 : i32
    return %c0_i32, %c0_i32_0 : i32, i32
  }
  func.func @transform_4(%arg0: i32) -> (i32, i32) {
    %c0_i32 = arith.constant 0 : i32
    %c0_i32_0 = arith.constant 0 : i32
    %c0_i32_1 = arith.constant 0 : i32
    return %c0_i32, %c0_i32_0 : i32, i32
  }
  func.func @transform_5(%arg0: i32) -> (i32, i32) {
    %c0_i32 = arith.constant 0 : i32
    %c0_i32_0 = arith.constant 0 : i32
    return %arg0, %c0_i32 : i32, i32
  }
}

</mosaic_0001>

<llo_original>
// kernel: tpu_custom_call.1
$region0: #{tpu_custom_call.1}
  #allocation0 [shape = 'u32[]', space=smem, size = 0x4, offset = 0x4, fixed_abs, tag = 'smem constant byte address 0x4 - core index']
  #allocation1 [shape = 'u32[144,128]{1,0:T(1,128)}', space=vmem, size = 0x12000, scoped, tag = 'internal scratch']
  %s0 = inlined_call_operand.vmem [shape: f32[64,32], index: 0, kind: input, shape index: {}]
  %s1 = inlined_call_operand.vmem [shape: f32[32,128], index: 1, kind: input, shape index: {}]
  %s2 = inlined_call_operand.vmem [shape: f32[1,128], index: 2, kind: input, shape index: {}]
  %s3 = inlined_call_operand.vmem [shape: f32[128,16], index: 3, kind: input, shape index: {}]
  %s4 = inlined_call_operand.vmem [shape: f32[1,16], index: 4, kind: input, shape index: {}]
  %s5 = inlined_call_operand.vmem [shape: f32[64,16], index: 5, kind: output, shape index: {}]
  %s6 = sld [smem:[#allocation0]]
  $region30: #{tpu_custom_call.1} parent=0
    _
  %s8 = ssub.s32 1, %s6
  %s9 = scalar_select 0, %s8, %s6
  // Predicated region
  $region2: #{tpu_custom_call.1} parent=0 // pred_check
    _
  $region3: #{tpu_custom_call.1} parent=0 // pred_check_branch
    %11 = sbr.rel (0) target = $region5
  $region4: #{tpu_custom_call.1} parent=0 // pred_region
    _
  $region5: #{tpu_custom_call.1} parent=0 // pred_fallthru
    _
  // Predicated region
  $region6: #{tpu_custom_call.1} parent=0 // pred_check
    _
  $region7: #{tpu_custom_call.1} parent=0 // pred_check_branch
    %13 = sbr.rel (0) target = $region9
  $region8: #{tpu_custom_call.1} parent=0 // pred_region
    _
  $region9: #{tpu_custom_call.1} parent=0 // pred_fallthru
    _
  // Predicated region
  $region10: #{tpu_custom_call.1} parent=0 // pred_check
    _
  $region11: #{tpu_custom_call.1} parent=0 // pred_check_branch
    %15 = sbr.rel (0) target = $region13
  $region12: #{tpu_custom_call.1} parent=0 // pred_region
    _
  $region13: #{tpu_custom_call.1} parent=0 // pred_fallthru
    _
  // Predicated region
  $region14: #{tpu_custom_call.1} parent=0 // pred_check
    _
  $region15: #{tpu_custom_call.1} parent=0 // pred_check_branch
    %17 = sbr.rel (0) target = $region17
  $region16: #{tpu_custom_call.1} parent=0 // pred_region
    _
  $region17: #{tpu_custom_call.1} parent=0 // pred_fallthru
    _
  // Predicated region
  $region18: #{tpu_custom_call.1} parent=0 // pred_check
    _
  $region19: #{tpu_custom_call.1} parent=0 // pred_check_branch
    %19 = sbr.rel (0) target = $region21
  $region20: #{tpu_custom_call.1} parent=0 // pred_region
    _
  $region21: #{tpu_custom_call.1} parent=0 // pred_fallthru
    _
  %v20 = vld [vmem:[%s0] sm:$0xff]
  %v21 = vld [vmem:[%s0 + $0x8] sm:$0xff]
  %v22 = vld [vmem:[%s0 + $0x10] sm:$0xff]
  %v23 = vld [vmem:[%s0 + $0x18] sm:$0xff]
  %v24 = vld [vmem:[%s0 + $0x20] sm:$0xff]
  %v25 = vld [vmem:[%s0 + $0x28] sm:$0xff]
  %v26 = vld [vmem:[%s0 + $0x30] sm:$0xff]
  %v27 = vld [vmem:[%s0 + $0x38] sm:$0xff]
  %v28 = vld [vmem:[%s1] sm:$0xff]
  %v29 = vld [vmem:[%s1 + $0x8] sm:$0xff]
  %v30 = vld [vmem:[%s1 + $0x10] sm:$0xff]
  %v31 = vld [vmem:[%s1 + $0x18] sm:$0xff]
  %v32 = vld [vmem:[%s2] sm:$0x1]
  %v34 = vlaneseq
  %v35 = vshrl.u32 %v34, 7
  %v36 = vsub.s32 0, %v35
  %v37 = vrot.slane %v32, %v36
  %vm39 = vcmask 261120
  %v41 = vsel %vm39, %v20, 0
  %v44 = vsel %vm39, %v21, 0
  %v47 = vsel %vm39, %v22, 0
  %v50 = vsel %vm39, %v23, 0
  %v53 = vsel %vm39, %v24, 0
  %v56 = vsel %vm39, %v25, 0
  %v59 = vsel %vm39, %v26, 0
  %v62 = vsel %vm39, %v27, 0
  %64 = vmatprep.subr.mxu0 0.0
  %65 = vmatpush1.msra.mxu0 %v28
  %66 = vmatprep.subr.mxu0 0.0
  %67 = vmatpush1.msra.mxu0 %v29
  %68 = vmatprep.subr.mxu0 0.0
  %69 = vmatpush1.msra.mxu0 %v30
  %70 = vmatprep.subr.mxu0 0.0
  %71 = vmatpush1.msra.mxu0 %v31
  %72 = vmatprep.subr.mxu0 0.0
  %73 = vmatpush1.msra.mxu0 0.0
  %74 = vmatprep.subr.mxu0 0.0
  %75 = vmatpush1.msra.mxu0 0.0
  %76 = vmatprep.subr.mxu0 0.0
  %77 = vmatpush1.msra.mxu0 0.0
  %78 = vmatprep.subr.mxu0 0.0
  %79 = vmatpush1.msra.mxu0 0.0
  %80 = vmatprep.subr.mxu0 0.0
  %81 = vmatpush1.msra.mxu0 0.0
  %82 = vmatprep.subr.mxu0 0.0
  %83 = vmatpush1.msra.mxu0 0.0
  %84 = vmatprep.subr.mxu0 0.0
  %85 = vmatpush1.msra.mxu0 0.0
  %86 = vmatprep.subr.mxu0 0.0
  %87 = vmatpush1.msra.mxu0 0.0
  %88 = vmatprep.subr.mxu0 0.0
  %89 = vmatpush1.msra.mxu0 0.0
  %90 = vmatprep.subr.mxu0 0.0
  %91 = vmatpush1.msra.mxu0 0.0
  %92 = vmatprep.subr.mxu0 0.0
  %93 = vmatpush1.msra.mxu0 0.0
  %94 = vmatprep.subr.mxu0 0.0
  %95 = vmatpush1.msra.mxu0 0.0
  %96 = vmatprep.subr.mxu0 0.0
  %97 = vmatpush1.msra.mxu0 0.0
  %98 = vmatprep.subr.mxu0 0.0
  %99 = vmatpush1.msra.mxu0 0.0
  %100 = vmatprep.subr.mxu0 0.0
  %101 = vmatpush1.msra.mxu0 0.0
  %102 = vmatprep.subr.mxu0 0.0
  %103 = vmatpush1.msra.mxu0 0.0
  %104 = vmatprep.subr.mxu0 0.0
  %105 = vmatpush1.msra.mxu0 0.0
  %106 = vmatprep.subr.mxu0 0.0
  %107 = vmatpush1.msra.mxu0 0.0
  %108 = vmatprep.subr.mxu0 0.0
  %109 = vmatpush1.msra.mxu0 0.0
  %110 = vmatprep.subr.mxu0 0.0
  %111 = vmatpush1.msra.mxu0 0.0
  %112 = vmatprep.subr.mxu0 0.0
  %113 = vmatpush1.msra.mxu0 0.0
  %114 = vmatprep.subr.mxu0 0.0
  %115 = vmatpush1.msra.mxu0 0.0
  %116 = vmatprep.subr.mxu0 0.0
  %117 = vmatpush1.msra.mxu0 0.0
  %118 = vmatprep.subr.mxu0 0.0
  %119 = vmatpush1.msra.mxu0 0.0
  %120 = vmatprep.subr.mxu0 0.0
  %121 = vmatpush1.msra.mxu0 0.0
  %122 = vmatprep.subr.mxu0 0.0
  %123 = vmatpush1.msra.mxu0 0.0
  %124 = vmatprep.subr.mxu0 0.0
  %125 = vmatpush1.msra.mxu0 0.0
  %126 = vmatprep.subr.mxu0 0.0
  %127 = vmatpush1.msra.mxu0 0.0
  %128 = vmatprep.mubr.f32.mxu0 0.0
  %129 = vmatmul.mubr.f32.gmra.mrb[0].mxu0 %v41
  %v130 = vpop.f32.mrb[0].mxu0
  %v131 = vadd.f32 %v37, %v130
  %v132 = vpop.f32.mrb[0].mxu0
  %133 = vmatprep.mubr.f32.mxu0 0.0
  %134 = vmatmul.mubr.f32.gmra.mrb[0].mxu0 %v44
  %v135 = vpop.f32.mrb[0].mxu0
  %v136 = vadd.f32 %v37, %v135
  %v137 = vpop.f32.mrb[0].mxu0
  %138 = vmatprep.mubr.f32.mxu0 0.0
  %139 = vmatmul.mubr.f32.gmra.mrb[0].mxu0 %v47
  %v140 = vpop.f32.mrb[0].mxu0
  %v141 = vadd.f32 %v37, %v140
  %v142 = vpop.f32.mrb[0].mxu0
  %143 = vmatprep.mubr.f32.mxu0 0.0
  %144 = vmatmul.mubr.f32.gmra.mrb[0].mxu0 %v50
  %v145 = vpop.f32.mrb[0].mxu0
  %v146 = vadd.f32 %v37, %v145
  %v147 = vpop.f32.mrb[0].mxu0
  %148 = vmatprep.mubr.f32.mxu0 0.0
  %149 = vmatmul.mubr.f32.gmra.mrb[0].mxu0 %v53
  %v150 = vpop.f32.mrb[0].mxu0
  %v151 = vadd.f32 %v37, %v150
  %v152 = vpop.f32.mrb[0].mxu0
  %153 = vmatprep.mubr.f32.mxu0 0.0
  %154 = vmatmul.mubr.f32.gmra.mrb[0].mxu0 %v56
  %v155 = vpop.f32.mrb[0].mxu0
  %v156 = vadd.f32 %v37, %v155
  %v157 = vpop.f32.mrb[0].mxu0
  %158 = vmatprep.mubr.f32.mxu0 0.0
  %159 = vmatmul.mubr.f32.gmra.mrb[0].mxu0 %v59
  %v160 = vpop.f32.mrb[0].mxu0
  %v161 = vadd.f32 %v37, %v160
  %v162 = vpop.f32.mrb[0].mxu0
  %163 = vmatprep.mubr.f32.mxu0 0.0
  %164 = vmatmul.mubr.f32.gmra.mrb[0].mxu0 %v62
  %v165 = vpop.f32.mrb[0].mxu0
  %v166 = vadd.f32 %v37, %v165
  %v167 = vpop.f32.mrb[0].mxu0
  %168 = vdwg.mxu0
  %v169 = vmax.f32 %v131, 0.0
  %v170 = vmax.f32 %v136, 0.0
  %v171 = vmax.f32 %v141, 0.0
  %v172 = vmax.f32 %v146, 0.0
  %v173 = vmax.f32 %v151, 0.0
  %v174 = vmax.f32 %v156, 0.0
  %v175 = vmax.f32 %v161, 0.0
  %v176 = vmax.f32 %v166, 0.0
  %v177 = vld [vmem:[%s3] sm:$0xff]
  %v178 = vld [vmem:[%s3 + $0x8] sm:$0xff]
  %v179 = vld [vmem:[%s3 + $0x10] sm:$0xff]
  %v180 = vld [vmem:[%s3 + $0x18] sm:$0xff]
  %v181 = vld [vmem:[%s3 + $0x20] sm:$0xff]
  %v182 = vld [vmem:[%s3 + $0x28] sm:$0xff]
  %v183 = vld [vmem:[%s3 + $0x30] sm:$0xff]
  %v184 = vld [vmem:[%s3 + $0x38] sm:$0xff]
  %v185 = vld [vmem:[%s3 + $0x40] sm:$0xff]
  %v186 = vld [vmem:[%s3 + $0x48] sm:$0xff]
  %v187 = vld [vmem:[%s3 + $0x50] sm:$0xff]
  %v188 = vld [vmem:[%s3 + $0x58] sm:$0xff]
  %v189 = vld [vmem:[%s3 + $0x60] sm:$0xff]
  %v190 = vld [vmem:[%s3 + $0x68] sm:$0xff]
  %v191 = vld [vmem:[%s3 + $0x70] sm:$0xff]
  %v192 = vld [vmem:[%s3 + $0x78] sm:$0xff]
  %v193 = vld [vmem:[%s4] sm:$0x1]
  %v195 = vlaneseq
  %v196 = vshrl.u32 %v195, 7
  %v197 = vsub.s32 0, %v196
  %v198 = vrot.slane %v193, %v197
  %200 = vmatprep.subr.mxu0 0.0
  %201 = vmatpush1.msra.mxu0 %v177
  %202 = vmatprep.subr.mxu0 0.0
  %203 = vmatpush1.msra.mxu0 %v178
  %204 = vmatprep.subr.mxu0 0.0
  %205 = vmatpush1.msra.mxu0 %v179
  %206 = vmatprep.subr.mxu0 0.0
  %207 = vmatpush1.msra.mxu0 %v180
  %208 = vmatprep.subr.mxu0 0.0
  %209 = vmatpush1.msra.mxu0 %v181
  %210 = vmatprep.subr.mxu0 0.0
  %211 = vmatpush1.msra.mxu0 %v182
  %212 = vmatprep.subr.mxu0 0.0
  %213 = vmatpush1.msra.mxu0 %v183
  %214 = vmatprep.subr.mxu0 0.0
  %215 = vmatpush1.msra.mxu0 %v184
  %216 = vmatprep.subr.mxu0 0.0
  %217 = vmatpush1.msra.mxu0 %v185
  %218 = vmatprep.subr.mxu0 0.0
  %219 = vmatpush1.msra.mxu0 %v186
  %220 = vmatprep.subr.mxu0 0.0
  %221 = vmatpush1.msra.mxu0 %v187
  %222 = vmatprep.subr.mxu0 0.0
  %223 = vmatpush1.msra.mxu0 %v188
  %224 = vmatprep.subr.mxu0 0.0
  %225 = vmatpush1.msra.mxu0 %v189
  %226 = vmatprep.subr.mxu0 0.0
  %227 = vmatpush1.msra.mxu0 %v190
  %228 = vmatprep.subr.mxu0 0.0
  %229 = vmatpush1.msra.mxu0 %v191
  %230 = vmatprep.subr.mxu0 0.0
  %231 = vmatpush1.msra.mxu0 %v192
  %232 = vmatprep.subr.mxu0 0.0
  %233 = vmatpush1.msra.mxu0 0.0
  %234 = vmatprep.subr.mxu0 0.0
  %235 = vmatpush1.msra.mxu0 0.0
  %236 = vmatprep.subr.mxu0 0.0
  %237 = vmatpush1.msra.mxu0 0.0
  %238 = vmatprep.subr.mxu0 0.0
  %239 = vmatpush1.msra.mxu0 0.0
  %240 = vmatprep.subr.mxu0 0.0
  %241 = vmatpush1.msra.mxu0 0.0
  %242 = vmatprep.subr.mxu0 0.0
  %243 = vmatpush1.msra.mxu0 0.0
  %244 = vmatprep.subr.mxu0 0.0
  %245 = vmatpush1.msra.mxu0 0.0
  %246 = vmatprep.subr.mxu0 0.0
  %247 = vmatpush1.msra.mxu0 0.0
  %248 = vmatprep.subr.mxu0 0.0
  %249 = vmatpush1.msra.mxu0 0.0
  %250 = vmatprep.subr.mxu0 0.0
  %251 = vmatpush1.msra.mxu0 0.0
  %252 = vmatprep.subr.mxu0 0.0
  %253 = vmatpush1.msra.mxu0 0.0
  %254 = vmatprep.subr.mxu0 0.0
  %255 = vmatpush1.msra.mxu0 0.0
  %256 = vmatprep.subr.mxu0 0.0
  %257 = vmatpush1.msra.mxu0 0.0
  %258 = vmatprep.subr.mxu0 0.0
  %259 = vmatpush1.msra.mxu0 0.0
  %260 = vmatprep.subr.mxu0 0.0
  %261 = vmatpush1.msra.mxu0 0.0
  %262 = vmatprep.subr.mxu0 0.0
  %263 = vmatpush1.msra.mxu0 0.0
  %264 = vmatprep.mubr.f32.mxu0 0.0
  %265 = vmatmul.mubr.f32.gmra.mrb[0].mxu0 %v169
  %v266 = vpop.f32.mrb[0].mxu0
  %v267 = vadd.f32 %v198, %v266
  %v268 = vpop.f32.mrb[0].mxu0
  %269 = vmatprep.mubr.f32.mxu0 0.0
  %270 = vmatmul.mubr.f32.gmra.mrb[0].mxu0 %v170
  %v271 = vpop.f32.mrb[0].mxu0
  %v272 = vadd.f32 %v198, %v271
  %v273 = vpop.f32.mrb[0].mxu0
  %274 = vmatprep.mubr.f32.mxu0 0.0
  %275 = vmatmul.mubr.f32.gmra.mrb[0].mxu0 %v171
  %v276 = vpop.f32.mrb[0].mxu0
  %v277 = vadd.f32 %v198, %v276
  %v278 = vpop.f32.mrb[0].mxu0
  %279 = vmatprep.mubr.f32.mxu0 0.0
  %280 = vmatmul.mubr.f32.gmra.mrb[0].mxu0 %v172
  %v281 = vpop.f32.mrb[0].mxu0
  %v282 = vadd.f32 %v198, %v281
  %v283 = vpop.f32.mrb[0].mxu0
  %284 = vmatprep.mubr.f32.mxu0 0.0
  %285 = vmatmul.mubr.f32.gmra.mrb[0].mxu0 %v173
  %v286 = vpop.f32.mrb[0].mxu0
  %v287 = vadd.f32 %v198, %v286
  %v288 = vpop.f32.mrb[0].mxu0
  %289 = vmatprep.mubr.f32.mxu0 0.0
  %290 = vmatmul.mubr.f32.gmra.mrb[0].mxu0 %v174
  %v291 = vpop.f32.mrb[0].mxu0
  %v292 = vadd.f32 %v198, %v291
  %v293 = vpop.f32.mrb[0].mxu0
  %294 = vmatprep.mubr.f32.mxu0 0.0
  %295 = vmatmul.mubr.f32.gmra.mrb[0].mxu0 %v175
  %v296 = vpop.f32.mrb[0].mxu0
  %v297 = vadd.f32 %v198, %v296
  %v298 = vpop.f32.mrb[0].mxu0
  %299 = vmatprep.mubr.f32.mxu0 0.0
  %300 = vmatmul.mubr.f32.gmra.mrb[0].mxu0 %v176
  %v301 = vpop.f32.mrb[0].mxu0
  %v302 = vadd.f32 %v198, %v301
  %v303 = vpop.f32.mrb[0].mxu0
  %304 = vdwg.mxu0
  %v305 = vxor.u32 %v267, 2147483648
  %v306 = vxor.u32 %v272, 2147483648
  %v307 = vxor.u32 %v277, 2147483648
  %v308 = vxor.u32 %v282, 2147483648
  %v309 = vxor.u32 %v287, 2147483648
  %v310 = vxor.u32 %v292, 2147483648
  %v311 = vxor.u32 %v297, 2147483648
  %v312 = vxor.u32 %v302, 2147483648
  %v313 = vmul.f32 %v305, 1.442695
  %v314 = vpow.pop %v313
  %v315 = vmul.f32 %v306, 1.442695
  %v316 = vpow.pop %v315
  %v317 = vmul.f32 %v307, 1.442695
  %v318 = vpow.pop %v317
  %v319 = vmul.f32 %v308, 1.442695
  %v320 = vpow.pop %v319
  %v321 = vmul.f32 %v309, 1.442695
  %v322 = vpow.pop %v321
  %v323 = vmul.f32 %v310, 1.442695
  %v324 = vpow.pop %v323
  %v325 = vmul.f32 %v311, 1.442695
  %v326 = vpow.pop %v325
  %v327 = vmul.f32 %v312, 1.442695
  %v328 = vpow.pop %v327
  %v329 = vadd.f32 %v314, 1.0
  %v330 = vadd.f32 %v316, 1.0
  %v331 = vadd.f32 %v318, 1.0
  %v332 = vadd.f32 %v320, 1.0
  %v333 = vadd.f32 %v322, 1.0
  %v334 = vadd.f32 %v324, 1.0
  %v335 = vadd.f32 %v326, 1.0
  %v336 = vadd.f32 %v328, 1.0
  %v337 = vrcp.pop %v329
  %v338 = vmul.f32 1.0, %v337
  %v339 = vrcp.pop %v330
  %v340 = vmul.f32 1.0, %v339
  %v341 = vrcp.pop %v331
  %v342 = vmul.f32 1.0, %v341
  %v343 = vrcp.pop %v332
  %v344 = vmul.f32 1.0, %v343
  %v345 = vrcp.pop %v333
  %v346 = vmul.f32 1.0, %v345
  %v347 = vrcp.pop %v334
  %v348 = vmul.f32 1.0, %v347
  %v349 = vrcp.pop %v335
  %v350 = vmul.f32 1.0, %v349
  %v351 = vrcp.pop %v336
  %v352 = vmul.f32 1.0, %v351
  %vm353 = vcmask 130048
  %354 = vst.msk [vmem:[%s5] sm:$0xff] %vm353, %v338
  %355 = vst.msk [vmem:[%s5 + $0x8] sm:$0xff] %vm353, %v340
  %356 = vst.msk [vmem:[%s5 + $0x10] sm:$0xff] %vm353, %v342
  %357 = vst.msk [vmem:[%s5 + $0x18] sm:$0xff] %vm353, %v344
  %358 = vst.msk [vmem:[%s5 + $0x20] sm:$0xff] %vm353, %v346
  %359 = vst.msk [vmem:[%s5 + $0x28] sm:$0xff] %vm353, %v348
  %360 = vst.msk [vmem:[%s5 + $0x30] sm:$0xff] %vm353, %v350
  %361 = vst.msk [vmem:[%s5 + $0x38] sm:$0xff] %vm353, %v352
  // Predicated region
  $region22: #{tpu_custom_call.1} parent=0 // pred_check
    _
  $region23: #{tpu_custom_call.1} parent=0 // pred_check_branch
    %363 = sbr.rel (0) target = $region25
  $region24: #{tpu_custom_call.1} parent=0 // pred_region
    _
  $region25: #{tpu_custom_call.1} parent=0 // pred_fallthru
    _
  // Predicated region
  $region26: #{tpu_custom_call.1} parent=0 // pred_check
    _
  $region27: #{tpu_custom_call.1} parent=0 // pred_check_branch
    %365 = sbr.rel (0) target = $region29
  $region28: #{tpu_custom_call.1} parent=0 // pred_region
    _
  $region29: #{tpu_custom_call.1} parent=0 // pred_fallthru
    _

</llo_original>
